<compile_context>
chip_gen: v5e
topology: v5e:2x2
jax: 0.10.0
libtpu: 0.0.40
codegen_flags: <defaults>
</compile_context>

<pallas_src>
import functools

import jax
import jax.numpy as jnp
from jax import lax
from jax.experimental import pallas as pl
from jax.experimental.pallas import tpu as pltpu

BATCH = 2
SEQ = 8
D_MODEL = 32
D_FF = 64
N_LAYERS = 2
EPS = 1e-5
NEG_BIG = -1e30  # finite mask value (avoid inf arithmetic in max-subtraction)


# ------------------------------ fused kernel -------------------------------


def _encoder_kernel(x_ref, wqkv_ref, wo_ref, w1_ref, w2_ref, g_ref, b_ref,
                    mask_ref, out_ref, attn_ref, *, apply_norm):
    """Fused encoder: N_LAYERS x (self-attention + FFN) + optional LayerNorm.

    Activations stay resident in vregs for the whole forward pass; the batch
    dimension is folded into the sublane axis and attention is computed as a
    single block-diagonal-masked softmax over the (B*L, B*L) score matrix.
    """
    x = x_ref[...]                                   # (B*L, D), float32
    mask = mask_ref[...]                             # (B*L, B*L), 0 / NEG_BIG
    inv_sqrt_d = 1.0 / (float(D_MODEL) ** 0.5)

    for li in range(N_LAYERS):                       # static unroll over layers
        # ---------------- self-attention (block-diagonal) ----------------
        # Fused QKV projection: single (B*L, D) @ (D, 3D) MXU matmul.
        qkv = jnp.dot(x, wqkv_ref[li], preferred_element_type=jnp.float32)
        # 1/sqrt(d) scale hoisted onto q (applied once, not per score matrix).
        q = qkv[:, 0:D_MODEL] * inv_sqrt_d
        k = qkv[:, D_MODEL:2 * D_MODEL]
        v = qkv[:, 2 * D_MODEL:3 * D_MODEL]

        # scores = q @ k^T expressed as a contraction over D so the MXU
        # consumes k directly (no materialized transpose).  One (16,16)
        # matmul instead of two (8,8) per-batch matmuls.
        s = lax.dot_general(q, k, (((1,), (1,)), ((), ())),
                            preferred_element_type=jnp.float32)  # (BL, BL)
        s = s + mask                                  # kill cross-batch blocks
        m = jnp.max(s, axis=-1, keepdims=True)
        p = jnp.exp(s - m)
        denom = jnp.sum(p, axis=-1, keepdims=True)
        a = p / denom                                 # exact softmax rows
        # Per-layer attention maps: the two diagonal 8x8 blocks.
        for b in range(BATCH):
            rows = slice(b * SEQ, (b + 1) * SEQ)
            attn_ref[li, b] = a[rows, rows]
        # Single PV matmul on the folded layout; stays in vregs (no scratch).
        o = jnp.dot(a, v, preferred_element_type=jnp.float32)    # (BL, D)

        # Output projection + residual.
        x = x + jnp.dot(o, wo_ref[li], preferred_element_type=jnp.float32)

        # -------- position-wise FFN (Conv1d k=1 -> ReLU -> Conv1d k=1) ------
        h = jnp.dot(x, w1_ref[li], preferred_element_type=jnp.float32)
        h = jnp.maximum(h, 0.0)
        x = x + jnp.dot(h, w2_ref[li], preferred_element_type=jnp.float32)

    # ---------------- final LayerNorm over d_model ----------------
    if apply_norm:
        mu = jnp.mean(x, axis=-1, keepdims=True)
        xc = x - mu
        var = jnp.mean(xc * xc, axis=-1, keepdims=True)
        x = xc * lax.rsqrt(var + EPS) * g_ref[...] + b_ref[...]

    out_ref[...] = x


# ------------------------------ pallas wrapper ------------------------------


@functools.partial(jax.jit, static_argnames=("apply_norm",))
def encoder_fused(x, wqkv, wo, w1, w2, gamma, beta, mask, apply_norm=True):
    """One jitted pallas_call running the whole encoder stack."""
    B, L, D = x.shape
    x2 = x.reshape(B * L, D)                         # fold batch into sublanes
    vmem = pl.BlockSpec(memory_space=pltpu.MemorySpace.VMEM)
    out2, attn = pl.pallas_call(
        functools.partial(_encoder_kernel, apply_norm=apply_norm),
        out_shape=(
            jax.ShapeDtypeStruct((B * L, D), jnp.float32),
            jax.ShapeDtypeStruct((N_LAYERS, B, L, L), jnp.float32),
        ),
        in_specs=[vmem] * 8,
        out_specs=(vmem, vmem),
    )(x2, wqkv, wo, w1, w2, gamma, beta, mask)
    return out2.reshape(B, L, D), attn


# -------------------------------- Encoder -----------------------------------


def prepare_encoder_params(layer_params, norm_params):
    """One-time packing of per-layer weights (hoisted out of the forward)."""
    packed = {
        # Fuse Wq|Wk|Wv into one (D, 3D) weight per layer.
        "wqkv": jnp.stack([jnp.concatenate([p["wq"], p["wk"], p["wv"]], axis=1)
                           for p in layer_params]),
        "wo": jnp.stack([p["wo"] for p in layer_params]),
        "w1": jnp.stack([p["w1"] for p in layer_params]),
        "w2": jnp.stack([p["w2"] for p in layer_params]),
    }
    if norm_params is None:
        packed["gamma"] = jnp.ones((1, D_MODEL), jnp.float32)
        packed["beta"] = jnp.zeros((1, D_MODEL), jnp.float32)
        packed["apply_norm"] = False
    else:
        packed["gamma"] = norm_params["gamma"]
        packed["beta"] = norm_params["beta"]
        packed["apply_norm"] = True
    # Precomputed block-diagonal softmax mask over the folded (B*L) axis.
    bl = BATCH * SEQ
    row_b = jnp.arange(bl, dtype=jnp.int32)[:, None] // SEQ
    col_b = jnp.arange(bl, dtype=jnp.int32)[None, :] // SEQ
    packed["mask"] = jnp.where(row_b == col_b, 0.0, NEG_BIG).astype(jnp.float32)
    return packed


def encoder_forward(x, packed, attn_mask=None):
    """Mirrors Encoder.forward: loop layers, collect attns, apply norm.

    The layer loop, attention, FFN and final norm are all fused into a single
    pallas_call; per-layer attention maps come back as one stacked array and
    are split into a Python list to match the PyTorch return value.
    """
    del attn_mask  # TODO(synk): attn_mask not supported (PyTorch default None)
    out, attn = encoder_fused(
        x, packed["wqkv"], packed["wo"], packed["w1"], packed["w2"],
        packed["gamma"], packed["beta"], packed["mask"],
        apply_norm=packed["apply_norm"])
    attns = [attn[i] for i in range(N_LAYERS)]
    return out, attns


def init_params(key):
    layer_params = []
    for li in range(N_LAYERS):
        k = jax.random.fold_in(key, li)
        ks = jax.random.split(k, 6)
        scale_d = 1.0 / jnp.sqrt(jnp.float32(D_MODEL))
        scale_f = 1.0 / jnp.sqrt(jnp.float32(D_FF))
        layer_params.append(
            {
                "wq": jax.random.normal(ks[0], (D_MODEL, D_MODEL), jnp.float32) * scale_d,
                "wk": jax.random.normal(ks[1], (D_MODEL, D_MODEL), jnp.float32) * scale_d,
                "wv": jax.random.normal(ks[2], (D_MODEL, D_MODEL), jnp.float32) * scale_d,
                "wo": jax.random.normal(ks[3], (D_MODEL, D_MODEL), jnp.float32) * scale_d,
                # conv1 / conv2 (kernel_size=1) stored transposed: (d_in, d_out)
                "w1": jax.random.normal(ks[4], (D_MODEL, D_FF), jnp.float32) * scale_d,
                "w2": jax.random.normal(ks[5], (D_FF, D_MODEL), jnp.float32) * scale_f,
            }
        )
    norm_params = {
        "gamma": jnp.ones((1, D_MODEL), jnp.float32),
        "beta": jnp.zeros((1, D_MODEL), jnp.float32),
    }
    return layer_params, norm_params


if __name__ == "__main__":
    key = jax.random.PRNGKey(0)
    kx, kp = jax.random.split(key)
    x = jax.random.normal(kx, (BATCH, SEQ, D_MODEL), jnp.float32)
    layer_params, norm_params = init_params(kp)
    packed = prepare_encoder_params(layer_params, norm_params)  # one-time prep

    out, attns = encoder_forward(x, packed, attn_mask=None)
    out = jax.block_until_ready(out)
    attns = [jax.block_until_ready(a) for a in attns]

    assert out.shape == (BATCH, SEQ, D_MODEL)
    assert len(attns) == N_LAYERS
    assert all(a.shape == (BATCH, SEQ, SEQ) for a in attns)
    assert bool(jnp.all(jnp.isfinite(out)))
    assert all(bool(jnp.all(jnp.isfinite(a))) for a in attns)
    # Softmax rows must sum to 1 (exact reciprocal now used).
    assert all(bool(jnp.allclose(jnp.sum(a, axis=-1), 1.0, atol=1e-5))
               for a in attns)
    print("KERNEL_OK")
</pallas_src>

<mosaic_0001>
module attributes {stable_mosaic.version = 11 : i64} {
  func.func @_encoder_kernel(%arg0: memref<16x32xf32, #tpu.memory_space<vmem>>, %arg1: memref<2x32x96xf32, #tpu.memory_space<vmem>>, %arg2: memref<2x32x32xf32, #tpu.memory_space<vmem>>, %arg3: memref<2x32x64xf32, #tpu.memory_space<vmem>>, %arg4: memref<2x64x32xf32, #tpu.memory_space<vmem>>, %arg5: memref<1x32xf32, #tpu.memory_space<vmem>>, %arg6: memref<1x32xf32, #tpu.memory_space<vmem>>, %arg7: memref<16x16xf32, #tpu.memory_space<vmem>>, %arg8: memref<16x32xf32, #tpu.memory_space<vmem>>, %arg9: memref<2x2x8x8xf32, #tpu.memory_space<vmem>>) attributes {dimension_semantics = [], scalar_prefetch = 0 : i64, scratch_operands = 0 : i64, tpu.core_type = #tpu.core_type<tc>} {
    %c0 = arith.constant 0 : index
    %c0_0 = arith.constant 0 : index
    %0 = vector.load %arg0[%c0, %c0_0] : memref<16x32xf32, #tpu.memory_space<vmem>>, vector<16x32xf32>
    %c0_1 = arith.constant 0 : index
    %c0_2 = arith.constant 0 : index
    %1 = vector.load %arg7[%c0_1, %c0_2] : memref<16x16xf32, #tpu.memory_space<vmem>>, vector<16x16xf32>
    %c0_3 = arith.constant 0 : index
    %c0_4 = arith.constant 0 : index
    %c0_5 = arith.constant 0 : index
    %2 = vector.load %arg1[%c0_3, %c0_4, %c0_5] : memref<2x32x96xf32, #tpu.memory_space<vmem>>, vector<1x32x96xf32>
    %3 = vector.shape_cast %2 : vector<1x32x96xf32> to vector<32x96xf32>
    %cst = arith.constant dense<0.000000e+00> : vector<16x96xf32>
    %4 = tpu.matmul %0, %3, %cst {dimension_numbers = #tpu.dot_dimension_numbers<[1], [0], [0], [1], [0, 0, 1, 1], [], []>} : vector<16x32xf32>, vector<32x96xf32>, vector<16x96xf32> -> vector<16x96xf32>
    %5 = vector.extract_strided_slice %4 {offsets = [0, 0], sizes = [16, 32], strides = [1, 1]} : vector<16x96xf32> to vector<16x32xf32>
    %cst_6 = arith.constant 0.176776692 : f32
    %6 = vector.broadcast %cst_6 : f32 to vector<16x32xf32>
    %7 = arith.mulf %5, %6 : vector<16x32xf32>
    %8 = vector.extract_strided_slice %4 {offsets = [0, 32], sizes = [16, 32], strides = [1, 1]} : vector<16x96xf32> to vector<16x32xf32>
    %9 = vector.extract_strided_slice %4 {offsets = [0, 64], sizes = [16, 32], strides = [1, 1]} : vector<16x96xf32> to vector<16x32xf32>
    %cst_7 = arith.constant dense<0.000000e+00> : vector<16x16xf32>
    %10 = tpu.matmul %7, %8, %cst_7 {dimension_numbers = #tpu.dot_dimension_numbers<[1], [1], [0], [0], [0, 0, 1, 0], [], []>} : vector<16x32xf32>, vector<16x32xf32>, vector<16x16xf32> -> vector<16x16xf32>
    %11 = arith.addf %10, %1 : vector<16x16xf32>
    %cst_8 = arith.constant dense<0xFF800000> : vector<16xf32>
    %12 = vector.multi_reduction <maximumf>, %11, %cst_8 [1] : vector<16x16xf32> to vector<16xf32>
    %13 = vector.shape_cast %12 : vector<16xf32> to vector<16x1xf32>
    %14 = vector.broadcast %13 : vector<16x1xf32> to vector<16x16xf32>
    %15 = arith.subf %11, %14 : vector<16x16xf32>
    %16 = math.exp %15 : vector<16x16xf32>
    %cst_9 = arith.constant dense<0.000000e+00> : vector<16xf32>
    %17 = vector.multi_reduction <add>, %16, %cst_9 [1] : vector<16x16xf32> to vector<16xf32>
    %18 = vector.shape_cast %17 : vector<16xf32> to vector<16x1xf32>
    %19 = vector.broadcast %18 : vector<16x1xf32> to vector<16x16xf32>
    %20 = arith.divf %16, %19 : vector<16x16xf32>
    %21 = vector.extract_strided_slice %20 {offsets = [0, 0], sizes = [8, 8], strides = [1, 1]} : vector<16x16xf32> to vector<8x8xf32>
    %c0_10 = arith.constant 0 : index
    %c0_11 = arith.constant 0 : index
    %c0_12 = arith.constant 0 : index
    %c0_13 = arith.constant 0 : index
    %22 = vector.load %arg9[%c0_10, %c0_11, %c0_12, %c0_13] : memref<2x2x8x8xf32, #tpu.memory_space<vmem>>, vector<1x1x8x8xf32>
    %23 = vector.shape_cast %22 : vector<1x1x8x8xf32> to vector<8x8xf32>
    %24 = vector.shape_cast %21 : vector<8x8xf32> to vector<1x1x8x8xf32>
    tpu.vector_store %arg9[%c0_10, %c0_11, %c0_12, %c0_13], %24 {strides = array<i32>} : memref<2x2x8x8xf32, #tpu.memory_space<vmem>>, vector<1x1x8x8xf32>,
    %25 = vector.extract_strided_slice %20 {offsets = [8, 8], sizes = [8, 8], strides = [1, 1]} : vector<16x16xf32> to vector<8x8xf32>
    %c0_14 = arith.constant 0 : index
    %c1 = arith.constant 1 : index
    %c0_15 = arith.constant 0 : index
    %c0_16 = arith.constant 0 : index
    %26 = vector.load %arg9[%c0_14, %c1, %c0_15, %c0_16] : memref<2x2x8x8xf32, #tpu.memory_space<vmem>>, vector<1x1x8x8xf32>
    %27 = vector.shape_cast %26 : vector<1x1x8x8xf32> to vector<8x8xf32>
    %28 = vector.shape_cast %25 : vector<8x8xf32> to vector<1x1x8x8xf32>
    tpu.vector_store %arg9[%c0_14, %c1, %c0_15, %c0_16], %28 {strides = array<i32>} : memref<2x2x8x8xf32, #tpu.memory_space<vmem>>, vector<1x1x8x8xf32>,
    %cst_17 = arith.constant dense<0.000000e+00> : vector<16x32xf32>
    %29 = tpu.matmul %20, %9, %cst_17 {dimension_numbers = #tpu.dot_dimension_numbers<[1], [0], [0], [1], [0, 0, 1, 1], [], []>} : vector<16x16xf32>, vector<16x32xf32>, vector<16x32xf32> -> vector<16x32xf32>
    %c0_18 = arith.constant 0 : index
    %c0_19 = arith.constant 0 : index
    %c0_20 = arith.constant 0 : index
    %30 = vector.load %arg2[%c0_18, %c0_19, %c0_20] : memref<2x32x32xf32, #tpu.memory_space<vmem>>, vector<1x32x32xf32>
    %31 = vector.shape_cast %30 : vector<1x32x32xf32> to vector<32x32xf32>
    %cst_21 = arith.constant dense<0.000000e+00> : vector<16x32xf32>
    %32 = tpu.matmul %29, %31, %cst_21 {dimension_numbers = #tpu.dot_dimension_numbers<[1], [0], [0], [1], [0, 0, 1, 1], [], []>} : vector<16x32xf32>, vector<32x32xf32>, vector<16x32xf32> -> vector<16x32xf32>
    %33 = arith.addf %0, %32 : vector<16x32xf32>
    %c0_22 = arith.constant 0 : index
    %c0_23 = arith.constant 0 : index
    %c0_24 = arith.constant 0 : index
    %34 = vector.load %arg3[%c0_22, %c0_23, %c0_24] : memref<2x32x64xf32, #tpu.memory_space<vmem>>, vector<1x32x64xf32>
    %35 = vector.shape_cast %34 : vector<1x32x64xf32> to vector<32x64xf32>
    %cst_25 = arith.constant dense<0.000000e+00> : vector<16x64xf32>
    %36 = tpu.matmul %33, %35, %cst_25 {dimension_numbers = #tpu.dot_dimension_numbers<[1], [0], [0], [1], [0, 0, 1, 1], [], []>} : vector<16x32xf32>, vector<32x64xf32>, vector<16x64xf32> -> vector<16x64xf32>
    %cst_26 = arith.constant 0.000000e+00 : f32
    %37 = vector.broadcast %cst_26 : f32 to vector<16x64xf32>
    %38 = arith.maximumf %36, %37 : vector<16x64xf32>
    %c0_27 = arith.constant 0 : index
    %c0_28 = arith.constant 0 : index
    %c0_29 = arith.constant 0 : index
    %39 = vector.load %arg4[%c0_27, %c0_28, %c0_29] : memref<2x64x32xf32, #tpu.memory_space<vmem>>, vector<1x64x32xf32>
    %40 = vector.shape_cast %39 : vector<1x64x32xf32> to vector<64x32xf32>
    %cst_30 = arith.constant dense<0.000000e+00> : vector<16x32xf32>
    %41 = tpu.matmul %38, %40, %cst_30 {dimension_numbers = #tpu.dot_dimension_numbers<[1], [0], [0], [1], [0, 0, 1, 1], [], []>} : vector<16x64xf32>, vector<64x32xf32>, vector<16x32xf32> -> vector<16x32xf32>
    %42 = arith.addf %33, %41 : vector<16x32xf32>
    %c1_31 = arith.constant 1 : index
    %c0_32 = arith.constant 0 : index
    %c0_33 = arith.constant 0 : index
    %43 = vector.load %arg1[%c1_31, %c0_32, %c0_33] : memref<2x32x96xf32, #tpu.memory_space<vmem>>, vector<1x32x96xf32>
    %44 = vector.shape_cast %43 : vector<1x32x96xf32> to vector<32x96xf32>
    %cst_34 = arith.constant dense<0.000000e+00> : vector<16x96xf32>
    %45 = tpu.matmul %42, %44, %cst_34 {dimension_numbers = #tpu.dot_dimension_numbers<[1], [0], [0], [1], [0, 0, 1, 1], [], []>} : vector<16x32xf32>, vector<32x96xf32>, vector<16x96xf32> -> vector<16x96xf32>
    %46 = vector.extract_strided_slice %45 {offsets = [0, 0], sizes = [16, 32], strides = [1, 1]} : vector<16x96xf32> to vector<16x32xf32>
    %cst_35 = arith.constant 0.176776692 : f32
    %47 = vector.broadcast %cst_35 : f32 to vector<16x32xf32>
    %48 = arith.mulf %46, %47 : vector<16x32xf32>
    %49 = vector.extract_strided_slice %45 {offsets = [0, 32], sizes = [16, 32], strides = [1, 1]} : vector<16x96xf32> to vector<16x32xf32>
    %50 = vector.extract_strided_slice %45 {offsets = [0, 64], sizes = [16, 32], strides = [1, 1]} : vector<16x96xf32> to vector<16x32xf32>
    %cst_36 = arith.constant dense<0.000000e+00> : vector<16x16xf32>
    %51 = tpu.matmul %48, %49, %cst_36 {dimension_numbers = #tpu.dot_dimension_numbers<[1], [1], [0], [0], [0, 0, 1, 0], [], []>} : vector<16x32xf32>, vector<16x32xf32>, vector<16x16xf32> -> vector<16x16xf32>
    %52 = arith.addf %51, %1 : vector<16x16xf32>
    %cst_37 = arith.constant dense<0xFF800000> : vector<16xf32>
    %53 = vector.multi_reduction <maximumf>, %52, %cst_37 [1] : vector<16x16xf32> to vector<16xf32>
    %54 = vector.shape_cast %53 : vector<16xf32> to vector<16x1xf32>
    %55 = vector.broadcast %54 : vector<16x1xf32> to vector<16x16xf32>
    %56 = arith.subf %52, %55 : vector<16x16xf32>
    %57 = math.exp %56 : vector<16x16xf32>
    %cst_38 = arith.constant dense<0.000000e+00> : vector<16xf32>
    %58 = vector.multi_reduction <add>, %57, %cst_38 [1] : vector<16x16xf32> to vector<16xf32>
    %59 = vector.shape_cast %58 : vector<16xf32> to vector<16x1xf32>
    %60 = vector.broadcast %59 : vector<16x1xf32> to vector<16x16xf32>
    %61 = arith.divf %57, %60 : vector<16x16xf32>
    %62 = vector.extract_strided_slice %61 {offsets = [0, 0], sizes = [8, 8], strides = [1, 1]} : vector<16x16xf32> to vector<8x8xf32>
    %c1_39 = arith.constant 1 : index
    %c0_40 = arith.constant 0 : index
    %c0_41 = arith.constant 0 : index
    %c0_42 = arith.constant 0 : index
    %63 = vector.load %arg9[%c1_39, %c0_40, %c0_41, %c0_42] : memref<2x2x8x8xf32, #tpu.memory_space<vmem>>, vector<1x1x8x8xf32>
    %64 = vector.shape_cast %63 : vector<1x1x8x8xf32> to vector<8x8xf32>
    %65 = vector.shape_cast %62 : vector<8x8xf32> to vector<1x1x8x8xf32>
    tpu.vector_store %arg9[%c1_39, %c0_40, %c0_41, %c0_42], %65 {strides = array<i32>} : memref<2x2x8x8xf32, #tpu.memory_space<vmem>>, vector<1x1x8x8xf32>,
    %66 = vector.extract_strided_slice %61 {offsets = [8, 8], sizes = [8, 8], strides = [1, 1]} : vector<16x16xf32> to vector<8x8xf32>
    %c1_43 = arith.constant 1 : index
    %c1_44 = arith.constant 1 : index
    %c0_45 = arith.constant 0 : index
    %c0_46 = arith.constant 0 : index
    %67 = vector.load %arg9[%c1_43, %c1_44, %c0_45, %c0_46] : memref<2x2x8x8xf32, #tpu.memory_space<vmem>>, vector<1x1x8x8xf32>
    %68 = vector.shape_cast %67 : vector<1x1x8x8xf32> to vector<8x8xf32>
    %69 = vector.shape_cast %66 : vector<8x8xf32> to vector<1x1x8x8xf32>
    tpu.vector_store %arg9[%c1_43, %c1_44, %c0_45, %c0_46], %69 {strides = array<i32>} : memref<2x2x8x8xf32, #tpu.memory_space<vmem>>, vector<1x1x8x8xf32>,
    %cst_47 = arith.constant dense<0.000000e+00> : vector<16x32xf32>
    %70 = tpu.matmul %61, %50, %cst_47 {dimension_numbers = #tpu.dot_dimension_numbers<[1], [0], [0], [1], [0, 0, 1, 1], [], []>} : vector<16x16xf32>, vector<16x32xf32>, vector<16x32xf32> -> vector<16x32xf32>
    %c1_48 = arith.constant 1 : index
    %c0_49 = arith.constant 0 : index
    %c0_50 = arith.constant 0 : index
    %71 = vector.load %arg2[%c1_48, %c0_49, %c0_50] : memref<2x32x32xf32, #tpu.memory_space<vmem>>, vector<1x32x32xf32>
    %72 = vector.shape_cast %71 : vector<1x32x32xf32> to vector<32x32xf32>
    %cst_51 = arith.constant dense<0.000000e+00> : vector<16x32xf32>
    %73 = tpu.matmul %70, %72, %cst_51 {dimension_numbers = #tpu.dot_dimension_numbers<[1], [0], [0], [1], [0, 0, 1, 1], [], []>} : vector<16x32xf32>, vector<32x32xf32>, vector<16x32xf32> -> vector<16x32xf32>
    %74 = arith.addf %42, %73 : vector<16x32xf32>
    %c1_52 = arith.constant 1 : index
    %c0_53 = arith.constant 0 : index
    %c0_54 = arith.constant 0 : index
    %75 = vector.load %arg3[%c1_52, %c0_53, %c0_54] : memref<2x32x64xf32, #tpu.memory_space<vmem>>, vector<1x32x64xf32>
    %76 = vector.shape_cast %75 : vector<1x32x64xf32> to vector<32x64xf32>
    %cst_55 = arith.constant dense<0.000000e+00> : vector<16x64xf32>
    %77 = tpu.matmul %74, %76, %cst_55 {dimension_numbers = #tpu.dot_dimension_numbers<[1], [0], [0], [1], [0, 0, 1, 1], [], []>} : vector<16x32xf32>, vector<32x64xf32>, vector<16x64xf32> -> vector<16x64xf32>
    %cst_56 = arith.constant 0.000000e+00 : f32
    %78 = vector.broadcast %cst_56 : f32 to vector<16x64xf32>
    %79 = arith.maximumf %77, %78 : vector<16x64xf32>
    %c1_57 = arith.constant 1 : index
    %c0_58 = arith.constant 0 : index
    %c0_59 = arith.constant 0 : index
    %80 = vector.load %arg4[%c1_57, %c0_58, %c0_59] : memref<2x64x32xf32, #tpu.memory_space<vmem>>, vector<1x64x32xf32>
    %81 = vector.shape_cast %80 : vector<1x64x32xf32> to vector<64x32xf32>
    %cst_60 = arith.constant dense<0.000000e+00> : vector<16x32xf32>
    %82 = tpu.matmul %79, %81, %cst_60 {dimension_numbers = #tpu.dot_dimension_numbers<[1], [0], [0], [1], [0, 0, 1, 1], [], []>} : vector<16x64xf32>, vector<64x32xf32>, vector<16x32xf32> -> vector<16x32xf32>
    %83 = arith.addf %74, %82 : vector<16x32xf32>
    %cst_61 = arith.constant dense<0.000000e+00> : vector<16xf32>
    %84 = vector.multi_reduction <add>, %83, %cst_61 [1] : vector<16x32xf32> to vector<16xf32>
    %85 = vector.shape_cast %84 : vector<16xf32> to vector<16x1xf32>
    %cst_62 = arith.constant 3.200000e+01 : f32
    %86 = vector.broadcast %cst_62 : f32 to vector<16x1xf32>
    %87 = arith.divf %85, %86 : vector<16x1xf32>
    %88 = vector.broadcast %87 : vector<16x1xf32> to vector<16x32xf32>
    %89 = arith.subf %83, %88 : vector<16x32xf32>
    %90 = arith.mulf %89, %89 : vector<16x32xf32>
    %cst_63 = arith.constant dense<0.000000e+00> : vector<16xf32>
    %91 = vector.multi_reduction <add>, %90, %cst_63 [1] : vector<16x32xf32> to vector<16xf32>
    %92 = vector.shape_cast %91 : vector<16xf32> to vector<16x1xf32>
    %cst_64 = arith.constant 3.200000e+01 : f32
    %93 = vector.broadcast %cst_64 : f32 to vector<16x1xf32>
    %94 = arith.divf %92, %93 : vector<16x1xf32>
    %cst_65 = arith.constant 9.99999974E-6 : f32
    %95 = vector.broadcast %cst_65 : f32 to vector<16x1xf32>
    %96 = arith.addf %94, %95 : vector<16x1xf32>
    %97 = math.rsqrt %96 : vector<16x1xf32>
    %98 = vector.broadcast %97 : vector<16x1xf32> to vector<16x32xf32>
    %99 = arith.mulf %89, %98 : vector<16x32xf32>
    %c0_66 = arith.constant 0 : index
    %c0_67 = arith.constant 0 : index
    %100 = vector.load %arg5[%c0_66, %c0_67] : memref<1x32xf32, #tpu.memory_space<vmem>>, vector<1x32xf32>
    %101 = vector.broadcast %100 : vector<1x32xf32> to vector<16x32xf32>
    %102 = arith.mulf %99, %101 : vector<16x32xf32>
    %c0_68 = arith.constant 0 : index
    %c0_69 = arith.constant 0 : index
    %103 = vector.load %arg6[%c0_68, %c0_69] : memref<1x32xf32, #tpu.memory_space<vmem>>, vector<1x32xf32>
    %104 = vector.broadcast %103 : vector<1x32xf32> to vector<16x32xf32>
    %105 = arith.addf %102, %104 : vector<16x32xf32>
    %c0_70 = arith.constant 0 : index
    %c0_71 = arith.constant 0 : index
    %106 = vector.load %arg8[%c0_70, %c0_71] : memref<16x32xf32, #tpu.memory_space<vmem>>, vector<16x32xf32>
    tpu.vector_store %arg8[%c0_70, %c0_71], %105 {strides = array<i32>} : memref<16x32xf32, #tpu.memory_space<vmem>>, vector<16x32xf32>,
    return
  }
}

</mosaic_0001>

<llo_original>
// kernel: encoder_fused.1
$region0: #{encoder_fused.1}
  #allocation0 [shape = 'u32[]', space=smem, size = 0x4, offset = 0x4, fixed_abs, tag = 'smem constant byte address 0x4 - core index']
  #allocation1 [shape = 'u32[72,128]{1,0:T(1,128)}', space=vmem, size = 0x9000, scoped, tag = 'internal scratch']
  %s0 = inlined_call_operand.hbm [shape: f32[16,32], index: 0, kind: input, shape index: {}]
  %s1 = inlined_call_operand.vmem [shape: f32[2,32,96], index: 1, kind: input, shape index: {}]
  %s2 = inlined_call_operand.vmem [shape: f32[2,32,32], index: 2, kind: input, shape index: {}]
  %s3 = inlined_call_operand.vmem [shape: f32[2,32,64], index: 3, kind: input, shape index: {}]
  %s4 = inlined_call_operand.vmem [shape: f32[2,64,32], index: 4, kind: input, shape index: {}]
  %s5 = inlined_call_operand.vmem [shape: f32[1,32], index: 5, kind: input, shape index: {}]
  %s6 = inlined_call_operand.vmem [shape: f32[1,32], index: 6, kind: input, shape index: {}]
  %s7 = inlined_call_operand.hbm [shape: f32[16,16], index: 7, kind: input, shape index: {}]
  %s8 = inlined_call_operand.hbm [shape: f32[16,32], index: 8, kind: output, shape index: {0}]
  %s9 = inlined_call_operand.hbm [shape: f32[2,2,8,8], index: 9, kind: output, shape index: {1}]
  %10 = xla_tuple %s8, %s9
  %s11 = sld [smem:[#allocation0]]
  $region58: #{encoder_fused.1} parent=0
    _
  %s13 = ssub.s32 1, %s11
  %s14 = scalar_select 0, %s13, %s11
  $region1: #{encoder_fused.1} parent=0
    #allocation2 [shape = 'u8[8192]{0}', space=vmem, size = 0x2000, scoped, tag = 'input window, operand 0, single buffered']
    #allocation3 [shape = 's32[1]{0}', space=sflag, size = 0x4, scoped, tag = 'scoped memory for encoder_fused.1']
    #allocation4 [shape = 's32[1]{0}', space=sflag, size = 0x4, scoped, tag = 'scoped memory for encoder_fused.1']
    #allocation5 [shape = 'u8[8192]{0}', space=vmem, size = 0x2000, scoped, tag = 'input window, operand 7, single buffered']
    #allocation6 [shape = 's32[1]{0}', space=sflag, size = 0x4, scoped, tag = 'scoped memory for encoder_fused.1']
    #allocation7 [shape = 'u8[8192]{0}', space=vmem, size = 0x2000, scoped, tag = 'output window, operand 0, single buffered']
    #allocation8 [shape = 'u8[16384]{0}', space=vmem, size = 0x4000, scoped, tag = 'output window, operand 1, single buffered']
    #allocation9 [shape = 's32[1]{0}', space=sflag, size = 0x4, scoped, tag = 'scoped memory for encoder_fused.1']
    %15 = vsyncpa [#allocation3], 0
    %16 = vsyncpa [#allocation6], 0
    %17 = vsyncpa [#allocation4], 0
    %18 = vsyncpa [#allocation9], 0
    // Predicated region
    $region2: #{encoder_fused.1} parent=1 // pred_check
      _
    $region3: #{encoder_fused.1} parent=1 // pred_check_branch
      %20 = sbr.rel (0) target = $region5
    $region4: #{encoder_fused.1} parent=1 // pred_region
      %22 = vsyncadd [#allocation3], 0
      %s23 = sshll.u32 %s0, 4
      %s24 = int_to_ptr.hbm [resolvable:$true] %s23
      %s25 = sshll.u32 [#allocation2], 4
      %s26 = int_to_ptr.vmem [resolvable:$true] %s25
      %31 = dma.hbm_to_vmem [thread:$0]  %s24, 256, %s26, [#allocation3], 128, 128, 8
    $region5: #{encoder_fused.1} parent=1 // pred_fallthru
      _
    // Predicated region
    $region6: #{encoder_fused.1} parent=1 // pred_check
      _
    $region7: #{encoder_fused.1} parent=1 // pred_check_branch
      %33 = sbr.rel (0) target = $region9
    $region8: #{encoder_fused.1} parent=1 // pred_region
      _
    $region9: #{encoder_fused.1} parent=1 // pred_fallthru
      _
    // Predicated region
    $region10: #{encoder_fused.1} parent=1 // pred_check
      _
    $region11: #{encoder_fused.1} parent=1 // pred_check_branch
      %35 = sbr.rel (0) target = $region13
    $region12: #{encoder_fused.1} parent=1 // pred_region
      _
    $region13: #{encoder_fused.1} parent=1 // pred_fallthru
      _
    // Predicated region
    $region14: #{encoder_fused.1} parent=1 // pred_check
      _
    $region15: #{encoder_fused.1} parent=1 // pred_check_branch
      %37 = sbr.rel (0) target = $region17
    $region16: #{encoder_fused.1} parent=1 // pred_region
      _
    $region17: #{encoder_fused.1} parent=1 // pred_fallthru
      _
    // Predicated region
    $region18: #{encoder_fused.1} parent=1 // pred_check
      _
    $region19: #{encoder_fused.1} parent=1 // pred_check_branch
      %39 = sbr.rel (0) target = $region21
    $region20: #{encoder_fused.1} parent=1 // pred_region
      _
    $region21: #{encoder_fused.1} parent=1 // pred_fallthru
      _
    // Predicated region
    $region22: #{encoder_fused.1} parent=1 // pred_check
      _
    $region23: #{encoder_fused.1} parent=1 // pred_check_branch
      %41 = sbr.rel (0) target = $region25
    $region24: #{encoder_fused.1} parent=1 // pred_region
      _
    $region25: #{encoder_fused.1} parent=1 // pred_fallthru
      _
    // Predicated region
    $region26: #{encoder_fused.1} parent=1 // pred_check
      _
    $region27: #{encoder_fused.1} parent=1 // pred_check_branch
      %43 = sbr.rel (0) target = $region29
    $region28: #{encoder_fused.1} parent=1 // pred_region
      _
    $region29: #{encoder_fused.1} parent=1 // pred_fallthru
      _
    // Predicated region
    $region30: #{encoder_fused.1} parent=1 // pred_check
      _
    $region31: #{encoder_fused.1} parent=1 // pred_check_branch
      %45 = sbr.rel (0) target = $region33
    $region32: #{encoder_fused.1} parent=1 // pred_region
      %47 = vsyncadd [#allocation6], 0
      %s48 = sshll.u32 %s7, 4
      %s49 = int_to_ptr.hbm [resolvable:$true] %s48
      %s50 = sshll.u32 [#allocation5], 4
      %s51 = int_to_ptr.vmem [resolvable:$true] %s50
      %56 = dma.hbm_to_vmem [thread:$0]  %s49, 256, %s51, [#allocation6], 128, 128, 8
    $region33: #{encoder_fused.1} parent=1 // pred_fallthru
      _
    // Predicated region
    $region34: #{encoder_fused.1} parent=1 // pred_check
      _
    $region35: #{encoder_fused.1} parent=1 // pred_check_branch
      %58 = sbr.rel (0) target = $region37
    $region36: #{encoder_fused.1} parent=1 // pred_region
      %60 = dma.done [#allocation3], 256
    $region37: #{encoder_fused.1} parent=1 // pred_fallthru
      _
    // Predicated region
    $region38: #{encoder_fused.1} parent=1 // pred_check
      _
    $region39: #{encoder_fused.1} parent=1 // pred_check_branch
      %62 = sbr.rel (0) target = $region41
    $region40: #{encoder_fused.1} parent=1 // pred_region
      %64 = dma.done [#allocation6], 256
    $region41: #{encoder_fused.1} parent=1 // pred_fallthru
      _
    %v65 = vld [vmem:[#allocation2] sm:$0xff]
    %v66 = vld [vmem:[#allocation2 + $0x8] sm:$0xff]
    %v67 = vld [vmem:[#allocation5] sm:$0xff]
    %v68 = vld [vmem:[#allocation5 + $0x8] sm:$0xff]
    %v69 = vld [vmem:[%s1] sm:$0xff]
    %v70 = vld [vmem:[%s1 + $0x8] sm:$0xff]
    %v71 = vld [vmem:[%s1 + $0x10] sm:$0xff]
    %v72 = vld [vmem:[%s1 + $0x18] sm:$0xff]
    %vm73 = vcmask 261120
    %v75 = vsel %vm73, %v65, 0
    %v78 = vsel %vm73, %v66, 0
    %80 = vmatpush.msra.mxu0 0.0
    %81 = vmatpush.msra.mxu0 0.0
    %82 = vmatpush.msra.mxu0 0.0
    %83 = vmatpush.msra.mxu0 0.0
    %84 = vmatpush.msra.mxu0 0.0
    %85 = vmatpush.msra.mxu0 0.0
    %86 = vmatpush.msra.mxu0 0.0
    %87 = vmatpush.msra.mxu0 0.0
    %88 = vmatpush.msra.mxu0 0.0
    %89 = vmatpush.msra.mxu0 0.0
    %90 = vmatpush.msra.mxu0 0.0
    %91 = vmatpush.msra.mxu0 0.0
    %92 = vmatpush.msra.mxu0 %v72
    %93 = vmatpush.msra.mxu0 %v71
    %94 = vmatpush.msra.mxu0 %v70
    %95 = vmatpush.msra.mxu0 %v69
    %96 = vmatmul.f32.gmra.mxu0 %v75
    %v97 = vpop.f32.mrf.mxu0
    %v98 = vadd.f32 0.0, %v97
    %99 = vmatmul.f32.gmra.mxu0 %v78
    %v100 = vpop.f32.mrf.mxu0
    %v101 = vadd.f32 0.0, %v100
    %102 = vdwg.mxu0
    %v103 = vmul.f32 %v98, 0.17677669
    %v104 = vmul.f32 %v101, 0.17677669
    %107 = vrot.lane.b32.xlu0 %v98, 96
    %v108 = vpop.permute.xlu0 %107
    %109 = vrot.lane.b32.xlu0 %v101, 96
    %v110 = vpop.permute.xlu0 %109
    %v112 = vsel %vm73, %v103, 0
    %v115 = vsel %vm73, %v104, 0
    %v117 = vsel %vm73, %v108, 0
    %v119 = vsel %vm73, %v110, 0
    %121 = vmatpush.xpose.msra.mxu0 0.0
    %122 = vmatpush.xpose.msra.mxu0 0.0
    %123 = vmatpush.xpose.msra.mxu0 0.0
    %124 = vmatpush.xpose.msra.mxu0 0.0
    %125 = vmatpush.xpose.msra.mxu0 0.0
    %126 = vmatpush.xpose.msra.mxu0 0.0
    %127 = vmatpush.xpose.msra.mxu0 0.0
    %128 = vmatpush.xpose.msra.mxu0 0.0
    %129 = vmatpush.xpose.msra.mxu0 0.0
    %130 = vmatpush.xpose.msra.mxu0 0.0
    %131 = vmatpush.xpose.msra.mxu0 0.0
    %132 = vmatpush.xpose.msra.mxu0 0.0
    %133 = vmatpush.xpose.msra.mxu0 0.0
    %134 = vmatpush.xpose.msra.mxu0 0.0
    %135 = vmatpush.xpose.msra.mxu0 %v119
    %136 = vmatpush.xpose.msra.mxu0 %v117
    %137 = vmatmul.f32.gmra.mxu0 %v112
    %v138 = vpop.f32.mrf.mxu0
    %v139 = vadd.f32 %v67, %v138
    %140 = vmatmul.f32.gmra.mxu0 %v115
    %v141 = vpop.f32.mrf.mxu0
    %v142 = vadd.f32 %v68, %v141
    %143 = vdwg.mxu0
    %vm144 = vcmask 130048
    %v145 = vsel %vm144, %v139, -inf
    %146 = vmax.xlane.f32.xlu0 %v145
    %v147 = vpop.xlane.xlu0 %146
    %v148 = vsel %vm144, %v142, -inf
    %149 = vmax.xlane.f32.xlu0 %v148
    %v150 = vpop.xlane.xlu0 %149
    %v151 = vsub.f32 %v139, %v147
    %v152 = vsub.f32 %v142, %v150
    %v153 = vmul.f32 %v151, 1.442695
    %v154 = vpow.pop %v153
    %v155 = vmul.f32 %v152, 1.442695
    %v156 = vpow.pop %v155
    %v157 = vsel %vm144, %v154, 0.0
    %158 = vadd.xlane.f32.xlu0 %v157
    %v159 = vpop.xlane.xlu0 %158
    %v160 = vsel %vm144, %v156, 0.0
    %161 = vadd.xlane.f32.xlu0 %v160
    %v162 = vpop.xlane.xlu0 %161
    %v163 = vrcp.pop %v159
    %v164 = vmul.f32 %v159, %v163
    %v165 = vsub.f32 1.0, %v164
    %v166 = vmul.f32 %v163, %v165
    %v167 = vadd.f32 %v163, %v166
    %vm168 = vweird.f32 %v159
    %vm169 = vweird.f32 %v163
    %vm170 = vmor %vm168, %vm169
    %v171 = vsel %vm170, %v163, %v167
    %v172 = vand.u32 2147483647, %v159
    %vm173 = vcmp.eq.f32.partialorder %v172, 8.507059e+37
    %v174 = vand.u32 %v159, 2147483648
    %v175 = vor.u32 1.1754944e-38, %v174
    %v176 = vsel %vm173, %v175, %v171
    %v177 = vmul.f32 %v154, %v176
    %v178 = vrcp.pop %v162
    %v179 = vmul.f32 %v162, %v178
    %v180 = vsub.f32 1.0, %v179
    %v181 = vmul.f32 %v178, %v180
    %v182 = vadd.f32 %v178, %v181
    %vm183 = vweird.f32 %v162
    %vm184 = vweird.f32 %v178
    %vm185 = vmor %vm183, %vm184
    %v186 = vsel %vm185, %v178, %v182
    %v187 = vand.u32 2147483647, %v162
    %vm188 = vcmp.eq.f32.partialorder %v187, 8.507059e+37
    %v189 = vand.u32 %v162, 2147483648
    %v190 = vor.u32 1.1754944e-38, %v189
    %v191 = vsel %vm188, %v190, %v186
    %v192 = vmul.f32 %v156, %v191
    %vm193 = vcmask 64512
    %194 = vst.msk [vmem:[#allocation8] sm:$0xff] %vm193, %v177
    %196 = vrot.lane.b32.xlu0 %v192, 120
    %v197 = vpop.permute.xlu0 %196
    %s199 = scalar_lea.vmem [#allocation8], 8
    %200 = vst.msk [vmem:[%s199] sm:$0xff] %vm193, %v197
    %201 = vrot.lane.b32.xlu0 %v98, 64
    %v202 = vpop.permute.xlu0 %201
    %203 = vrot.lane.b32.xlu0 %v101, 64
    %v204 = vpop.permute.xlu0 %203
    %v208 = vsel %vm144, %v177, 0
    %v210 = vsel %vm144, %v192, 0
    %212 = vmatpush.msra.mxu0 0.0
    %213 = vmatpush.msra.mxu0 0.0
    %214 = vmatpush.msra.mxu0 0.0
    %215 = vmatpush.msra.mxu0 0.0
    %216 = vmatpush.msra.mxu0 0.0
    %217 = vmatpush.msra.mxu0 0.0
    %218 = vmatpush.msra.mxu0 0.0
    %219 = vmatpush.msra.mxu0 0.0
    %220 = vmatpush.msra.mxu0 0.0
    %221 = vmatpush.msra.mxu0 0.0
    %222 = vmatpush.msra.mxu0 0.0
    %223 = vmatpush.msra.mxu0 0.0
    %224 = vmatpush.msra.mxu0 0.0
    %225 = vmatpush.msra.mxu0 0.0
    %226 = vmatpush.msra.mxu0 %v204
    %227 = vmatpush.msra.mxu0 %v202
    %228 = vmatmul.f32.gmra.mxu0 %v208
    %v229 = vpop.f32.mrf.mxu0
    %v230 = vadd.f32 0.0, %v229
    %231 = vmatmul.f32.gmra.mxu0 %v210
    %v232 = vpop.f32.mrf.mxu0
    %v233 = vadd.f32 0.0, %v232
    %234 = vdwg.mxu0
    %v235 = vld [vmem:[%s2] sm:$0xff]
    %v236 = vld [vmem:[%s2 + $0x8] sm:$0xff]
    %v237 = vld [vmem:[%s2 + $0x10] sm:$0xff]
    %v238 = vld [vmem:[%s2 + $0x18] sm:$0xff]
    %v240 = vsel %vm73, %v230, 0
    %v243 = vsel %vm73, %v233, 0
    %245 = vmatpush.msra.mxu0 0.0
    %246 = vmatpush.msra.mxu0 0.0
    %247 = vmatpush.msra.mxu0 0.0
    %248 = vmatpush.msra.mxu0 0.0
    %249 = vmatpush.msra.mxu0 0.0
    %250 = vmatpush.msra.mxu0 0.0
    %251 = vmatpush.msra.mxu0 0.0
    %252 = vmatpush.msra.mxu0 0.0
    %253 = vmatpush.msra.mxu0 0.0
    %254 = vmatpush.msra.mxu0 0.0
    %255 = vmatpush.msra.mxu0 0.0
    %256 = vmatpush.msra.mxu0 0.0
    %257 = vmatpush.msra.mxu0 %v238
    %258 = vmatpush.msra.mxu0 %v237
    %259 = vmatpush.msra.mxu0 %v236
    %260 = vmatpush.msra.mxu0 %v235
    %261 = vmatmul.f32.gmra.mxu0 %v240
    %v262 = vpop.f32.mrf.mxu0
    %v263 = vadd.f32 0.0, %v262
    %264 = vmatmul.f32.gmra.mxu0 %v243
    %v265 = vpop.f32.mrf.mxu0
    %v266 = vadd.f32 0.0, %v265
    %267 = vdwg.mxu0
    %v268 = vadd.f32 %v65, %v263
    %v269 = vadd.f32 %v66, %v266
    %v270 = vld [vmem:[%s3] sm:$0xff]
    %v271 = vld [vmem:[%s3 + $0x8] sm:$0xff]
    %v272 = vld [vmem:[%s3 + $0x10] sm:$0xff]
    %v273 = vld [vmem:[%s3 + $0x18] sm:$0xff]
    %v275 = vsel %vm73, %v268, 0
    %v278 = vsel %vm73, %v269, 0
    %280 = vmatpush.msra.mxu0 0.0
    %281 = vmatpush.msra.mxu0 0.0
    %282 = vmatpush.msra.mxu0 0.0
    %283 = vmatpush.msra.mxu0 0.0
    %284 = vmatpush.msra.mxu0 0.0
    %285 = vmatpush.msra.mxu0 0.0
    %286 = vmatpush.msra.mxu0 0.0
    %287 = vmatpush.msra.mxu0 0.0
    %288 = vmatpush.msra.mxu0 0.0
    %289 = vmatpush.msra.mxu0 0.0
    %290 = vmatpush.msra.mxu0 0.0
    %291 = vmatpush.msra.mxu0 0.0
    %292 = vmatpush.msra.mxu0 %v273
    %293 = vmatpush.msra.mxu0 %v272
    %294 = vmatpush.msra.mxu0 %v271
    %295 = vmatpush.msra.mxu0 %v270
    %296 = vmatmul.f32.gmra.mxu0 %v275
    %v297 = vpop.f32.mrf.mxu0
    %v298 = vadd.f32 0.0, %v297
    %299 = vmatmul.f32.gmra.mxu0 %v278
    %v300 = vpop.f32.mrf.mxu0
    %v301 = vadd.f32 0.0, %v300
    %302 = vdwg.mxu0
    %v303 = vmax.f32 %v298, 0.0
    %v304 = vmax.f32 %v301, 0.0
    %v305 = vld [vmem:[%s4] sm:$0xff]
    %v306 = vld [vmem:[%s4 + $0x8] sm:$0xff]
    %v307 = vld [vmem:[%s4 + $0x10] sm:$0xff]
    %v308 = vld [vmem:[%s4 + $0x18] sm:$0xff]
    %v309 = vld [vmem:[%s4 + $0x20] sm:$0xff]
    %v310 = vld [vmem:[%s4 + $0x28] sm:$0xff]
    %v311 = vld [vmem:[%s4 + $0x30] sm:$0xff]
    %v312 = vld [vmem:[%s4 + $0x38] sm:$0xff]
    %vm313 = vcmask 523264
    %v315 = vsel %vm313, %v303, 0
    %v318 = vsel %vm313, %v304, 0
    %320 = vmatpush.msra.mxu0 0.0
    %321 = vmatpush.msra.mxu0 0.0
    %322 = vmatpush.msra.mxu0 0.0
    %323 = vmatpush.msra.mxu0 0.0
    %324 = vmatpush.msra.mxu0 0.0
    %325 = vmatpush.msra.mxu0 0.0
    %326 = vmatpush.msra.mxu0 0.0
    %327 = vmatpush.msra.mxu0 0.0
    %328 = vmatpush.msra.mxu0 %v312
    %329 = vmatpush.msra.mxu0 %v311
    %330 = vmatpush.msra.mxu0 %v310
    %331 = vmatpush.msra.mxu0 %v309
    %332 = vmatpush.msra.mxu0 %v308
    %333 = vmatpush.msra.mxu0 %v307
    %334 = vmatpush.msra.mxu0 %v306
    %335 = vmatpush.msra.mxu0 %v305
    %336 = vmatmul.f32.gmra.mxu0 %v315
    %v337 = vpop.f32.mrf.mxu0
    %v338 = vadd.f32 0.0, %v337
    %339 = vmatmul.f32.gmra.mxu0 %v318
    %v340 = vpop.f32.mrf.mxu0
    %v341 = vadd.f32 0.0, %v340
    %342 = vdwg.mxu0
    %v343 = vadd.f32 %v268, %v338
    %v344 = vadd.f32 %v269, %v341
    %s345 = scalar_lea.vmem %s1, 32
    %v346 = vld [vmem:[%s345] sm:$0xff]
    %v347 = vld [vmem:[%s345 + $0x8] sm:$0xff]
    %v348 = vld [vmem:[%s345 + $0x10] sm:$0xff]
    %v349 = vld [vmem:[%s345 + $0x18] sm:$0xff]
    %v351 = vsel %vm73, %v343, 0
    %v354 = vsel %vm73, %v344, 0
    %356 = vmatpush.msra.mxu0 0.0
    %357 = vmatpush.msra.mxu0 0.0
    %358 = vmatpush.msra.mxu0 0.0
    %359 = vmatpush.msra.mxu0 0.0
    %360 = vmatpush.msra.mxu0 0.0
    %361 = vmatpush.msra.mxu0 0.0
    %362 = vmatpush.msra.mxu0 0.0
    %363 = vmatpush.msra.mxu0 0.0
    %364 = vmatpush.msra.mxu0 0.0
    %365 = vmatpush.msra.mxu0 0.0
    %366 = vmatpush.msra.mxu0 0.0
    %367 = vmatpush.msra.mxu0 0.0
    %368 = vmatpush.msra.mxu0 %v349
    %369 = vmatpush.msra.mxu0 %v348
    %370 = vmatpush.msra.mxu0 %v347
    %371 = vmatpush.msra.mxu0 %v346
    %372 = vmatmul.f32.gmra.mxu0 %v351
    %v373 = vpop.f32.mrf.mxu0
    %v374 = vadd.f32 0.0, %v373
    %375 = vmatmul.f32.gmra.mxu0 %v354
    %v376 = vpop.f32.mrf.mxu0
    %v377 = vadd.f32 0.0, %v376
    %378 = vdwg.mxu0
    %v379 = vmul.f32 %v374, 0.17677669
    %v380 = vmul.f32 %v377, 0.17677669
    %383 = vrot.lane.b32.xlu0 %v374, 96
    %v384 = vpop.permute.xlu0 %383
    %385 = vrot.lane.b32.xlu0 %v377, 96
    %v386 = vpop.permute.xlu0 %385
    %v388 = vsel %vm73, %v379, 0
    %v391 = vsel %vm73, %v380, 0
    %v393 = vsel %vm73, %v384, 0
    %v395 = vsel %vm73, %v386, 0
    %397 = vmatpush.xpose.msra.mxu0 0.0
    %398 = vmatpush.xpose.msra.mxu0 0.0
    %399 = vmatpush.xpose.msra.mxu0 0.0
    %400 = vmatpush.xpose.msra.mxu0 0.0
    %401 = vmatpush.xpose.msra.mxu0 0.0
    %402 = vmatpush.xpose.msra.mxu0 0.0
    %403 = vmatpush.xpose.msra.mxu0 0.0
    %404 = vmatpush.xpose.msra.mxu0 0.0
    %405 = vmatpush.xpose.msra.mxu0 0.0
    %406 = vmatpush.xpose.msra.mxu0 0.0
    %407 = vmatpush.xpose.msra.mxu0 0.0
    %408 = vmatpush.xpose.msra.mxu0 0.0
    %409 = vmatpush.xpose.msra.mxu0 0.0
    %410 = vmatpush.xpose.msra.mxu0 0.0
    %411 = vmatpush.xpose.msra.mxu0 %v395
    %412 = vmatpush.xpose.msra.mxu0 %v393
    %413 = vmatmul.f32.gmra.mxu0 %v388
    %v414 = vpop.f32.mrf.mxu0
    %v415 = vadd.f32 %v67, %v414
    %416 = vmatmul.f32.gmra.mxu0 %v391
    %v417 = vpop.f32.mrf.mxu0
    %v418 = vadd.f32 %v68, %v417
    %419 = vdwg.mxu0
    %v420 = vsel %vm144, %v415, -inf
    %421 = vmax.xlane.f32.xlu0 %v420
    %v422 = vpop.xlane.xlu0 %421
    %v423 = vsel %vm144, %v418, -inf
    %424 = vmax.xlane.f32.xlu0 %v423
    %v425 = vpop.xlane.xlu0 %424
    %v426 = vsub.f32 %v415, %v422
    %v427 = vsub.f32 %v418, %v425
    %v428 = vmul.f32 %v426, 1.442695
    %v429 = vpow.pop %v428
    %v430 = vmul.f32 %v427, 1.442695
    %v431 = vpow.pop %v430
    %v432 = vsel %vm144, %v429, 0.0
    %433 = vadd.xlane.f32.xlu0 %v432
    %v434 = vpop.xlane.xlu0 %433
    %v435 = vsel %vm144, %v431, 0.0
    %436 = vadd.xlane.f32.xlu0 %v435
    %v437 = vpop.xlane.xlu0 %436
    %v438 = vrcp.pop %v434
    %v439 = vmul.f32 %v434, %v438
    %v440 = vsub.f32 1.0, %v439
    %v441 = vmul.f32 %v438, %v440
    %v442 = vadd.f32 %v438, %v441
    %vm443 = vweird.f32 %v434
    %vm444 = vweird.f32 %v438
    %vm445 = vmor %vm443, %vm444
    %v446 = vsel %vm445, %v438, %v442
    %v447 = vand.u32 2147483647, %v434
    %vm448 = vcmp.eq.f32.partialorder %v447, 8.507059e+37
    %v449 = vand.u32 %v434, 2147483648
    %v450 = vor.u32 1.1754944e-38, %v449
    %v451 = vsel %vm448, %v450, %v446
    %v452 = vmul.f32 %v429, %v451
    %v453 = vrcp.pop %v437
    %v454 = vmul.f32 %v437, %v453
    %v455 = vsub.f32 1.0, %v454
    %v456 = vmul.f32 %v453, %v455
    %v457 = vadd.f32 %v453, %v456
    %vm458 = vweird.f32 %v437
    %vm459 = vweird.f32 %v453
    %vm460 = vmor %vm458, %vm459
    %v461 = vsel %vm460, %v453, %v457
    %v462 = vand.u32 2147483647, %v437
    %vm463 = vcmp.eq.f32.partialorder %v462, 8.507059e+37
    %v464 = vand.u32 %v437, 2147483648
    %v465 = vor.u32 1.1754944e-38, %v464
    %v466 = vsel %vm463, %v465, %v461
    %v467 = vmul.f32 %v431, %v466
    %s468 = scalar_lea.vmem [#allocation8], 16
    %469 = vst.msk [vmem:[%s468] sm:$0xff] %vm193, %v452
    %471 = vrot.lane.b32.xlu0 %v467, 120
    %v472 = vpop.permute.xlu0 %471
    %s474 = scalar_lea.vmem [#allocation8], 24
    %475 = vst.msk [vmem:[%s474] sm:$0xff] %vm193, %v472
    %476 = vrot.lane.b32.xlu0 %v374, 64
    %v477 = vpop.permute.xlu0 %476
    %478 = vrot.lane.b32.xlu0 %v377, 64
    %v479 = vpop.permute.xlu0 %478
    %v483 = vsel %vm144, %v452, 0
    %v485 = vsel %vm144, %v467, 0
    %487 = vmatpush.msra.mxu0 0.0
    %488 = vmatpush.msra.mxu0 0.0
    %489 = vmatpush.msra.mxu0 0.0
    %490 = vmatpush.msra.mxu0 0.0
    %491 = vmatpush.msra.mxu0 0.0
    %492 = vmatpush.msra.mxu0 0.0
    %493 = vmatpush.msra.mxu0 0.0
    %494 = vmatpush.msra.mxu0 0.0
    %495 = vmatpush.msra.mxu0 0.0
    %496 = vmatpush.msra.mxu0 0.0
    %497 = vmatpush.msra.mxu0 0.0
    %498 = vmatpush.msra.mxu0 0.0
    %499 = vmatpush.msra.mxu0 0.0
    %500 = vmatpush.msra.mxu0 0.0
    %501 = vmatpush.msra.mxu0 %v479
    %502 = vmatpush.msra.mxu0 %v477
    %503 = vmatmul.f32.gmra.mxu0 %v483
    %v504 = vpop.f32.mrf.mxu0
    %v505 = vadd.f32 0.0, %v504
    %506 = vmatmul.f32.gmra.mxu0 %v485
    %v507 = vpop.f32.mrf.mxu0
    %v508 = vadd.f32 0.0, %v507
    %509 = vdwg.mxu0
    %s510 = scalar_lea.vmem %s2, 32
    %v511 = vld [vmem:[%s510] sm:$0xff]
    %v512 = vld [vmem:[%s510 + $0x8] sm:$0xff]
    %v513 = vld [vmem:[%s510 + $0x10] sm:$0xff]
    %v514 = vld [vmem:[%s510 + $0x18] sm:$0xff]
    %v516 = vsel %vm73, %v505, 0
    %v519 = vsel %vm73, %v508, 0
    %521 = vmatpush.msra.mxu0 0.0
    %522 = vmatpush.msra.mxu0 0.0
    %523 = vmatpush.msra.mxu0 0.0
    %524 = vmatpush.msra.mxu0 0.0
    %525 = vmatpush.msra.mxu0 0.0
    %526 = vmatpush.msra.mxu0 0.0
    %527 = vmatpush.msra.mxu0 0.0
    %528 = vmatpush.msra.mxu0 0.0
    %529 = vmatpush.msra.mxu0 0.0
    %530 = vmatpush.msra.mxu0 0.0
    %531 = vmatpush.msra.mxu0 0.0
    %532 = vmatpush.msra.mxu0 0.0
    %533 = vmatpush.msra.mxu0 %v514
    %534 = vmatpush.msra.mxu0 %v513
    %535 = vmatpush.msra.mxu0 %v512
    %536 = vmatpush.msra.mxu0 %v511
    %537 = vmatmul.f32.gmra.mxu0 %v516
    %v538 = vpop.f32.mrf.mxu0
    %v539 = vadd.f32 0.0, %v538
    %540 = vmatmul.f32.gmra.mxu0 %v519
    %v541 = vpop.f32.mrf.mxu0
    %v542 = vadd.f32 0.0, %v541
    %543 = vdwg.mxu0
    %v544 = vadd.f32 %v343, %v539
    %v545 = vadd.f32 %v344, %v542
    %s546 = scalar_lea.vmem %s3, 32
    %v547 = vld [vmem:[%s546] sm:$0xff]
    %v548 = vld [vmem:[%s546 + $0x8] sm:$0xff]
    %v549 = vld [vmem:[%s546 + $0x10] sm:$0xff]
    %v550 = vld [vmem:[%s546 + $0x18] sm:$0xff]
    %v552 = vsel %vm73, %v544, 0
    %v555 = vsel %vm73, %v545, 0
    %557 = vmatpush.msra.mxu0 0.0
    %558 = vmatpush.msra.mxu0 0.0
    %559 = vmatpush.msra.mxu0 0.0
    %560 = vmatpush.msra.mxu0 0.0
    %561 = vmatpush.msra.mxu0 0.0
    %562 = vmatpush.msra.mxu0 0.0
    %563 = vmatpush.msra.mxu0 0.0
    %564 = vmatpush.msra.mxu0 0.0
    %565 = vmatpush.msra.mxu0 0.0
    %566 = vmatpush.msra.mxu0 0.0
    %567 = vmatpush.msra.mxu0 0.0
    %568 = vmatpush.msra.mxu0 0.0
    %569 = vmatpush.msra.mxu0 %v550
    %570 = vmatpush.msra.mxu0 %v549
    %571 = vmatpush.msra.mxu0 %v548
    %572 = vmatpush.msra.mxu0 %v547
    %573 = vmatmul.f32.gmra.mxu0 %v552
    %v574 = vpop.f32.mrf.mxu0
    %v575 = vadd.f32 0.0, %v574
    %576 = vmatmul.f32.gmra.mxu0 %v555
    %v577 = vpop.f32.mrf.mxu0
    %v578 = vadd.f32 0.0, %v577
    %579 = vdwg.mxu0
    %v580 = vmax.f32 %v575, 0.0
    %v581 = vmax.f32 %v578, 0.0
    %s582 = scalar_lea.vmem %s4, 64
    %v583 = vld [vmem:[%s582] sm:$0xff]
    %v584 = vld [vmem:[%s582 + $0x8] sm:$0xff]
    %v585 = vld [vmem:[%s582 + $0x10] sm:$0xff]
    %v586 = vld [vmem:[%s582 + $0x18] sm:$0xff]
    %v587 = vld [vmem:[%s582 + $0x20] sm:$0xff]
    %v588 = vld [vmem:[%s582 + $0x28] sm:$0xff]
    %v589 = vld [vmem:[%s582 + $0x30] sm:$0xff]
    %v590 = vld [vmem:[%s582 + $0x38] sm:$0xff]
    %v592 = vsel %vm313, %v580, 0
    %v595 = vsel %vm313, %v581, 0
    %597 = vmatpush.msra.mxu0 0.0
    %598 = vmatpush.msra.mxu0 0.0
    %599 = vmatpush.msra.mxu0 0.0
    %600 = vmatpush.msra.mxu0 0.0
    %601 = vmatpush.msra.mxu0 0.0
    %602 = vmatpush.msra.mxu0 0.0
    %603 = vmatpush.msra.mxu0 0.0
    %604 = vmatpush.msra.mxu0 0.0
    %605 = vmatpush.msra.mxu0 %v590
    %606 = vmatpush.msra.mxu0 %v589
    %607 = vmatpush.msra.mxu0 %v588
    %608 = vmatpush.msra.mxu0 %v587
    %609 = vmatpush.msra.mxu0 %v586
    %610 = vmatpush.msra.mxu0 %v585
    %611 = vmatpush.msra.mxu0 %v584
    %612 = vmatpush.msra.mxu0 %v583
    %613 = vmatmul.f32.gmra.mxu0 %v592
    %v614 = vpop.f32.mrf.mxu0
    %v615 = vadd.f32 0.0, %v614
    %616 = vmatmul.f32.gmra.mxu0 %v595
    %v617 = vpop.f32.mrf.mxu0
    %v618 = vadd.f32 0.0, %v617
    %619 = vdwg.mxu0
    %v620 = vadd.f32 %v544, %v615
    %v621 = vadd.f32 %v545, %v618
    %v622 = vsel %vm73, %v620, 0.0
    %623 = vadd.xlane.f32.xlu0 %v622
    %v624 = vpop.xlane.xlu0 %623
    %v625 = vsel %vm73, %v621, 0.0
    %626 = vadd.xlane.f32.xlu0 %v625
    %v627 = vpop.xlane.xlu0 %626
    %v628 = vrcp.pop 32.0
    %v629 = vmul.f32 32.0, %v628
    %v630 = vsub.f32 1.0, %v629
    %v631 = vmul.f32 %v628, %v630
    %v632 = vadd.f32 %v628, %v631
    %vm633 = vweird.f32 %v628
    %v634 = vsel %vm633, %v628, %v632
    %v635 = vmul.f32 %v624, %v634
    %v636 = vmul.f32 %v627, %v634
    %v637 = vsub.f32 %v620, %v635
    %v638 = vsub.f32 %v621, %v636
    %v639 = vmul.f32 %v637, %v637
    %v640 = vmul.f32 %v638, %v638
    %v641 = vsel %vm73, %v639, 0.0
    %642 = vadd.xlane.f32.xlu0 %v641
    %v643 = vpop.xlane.xlu0 %642
    %v644 = vsel %vm73, %v640, 0.0
    %645 = vadd.xlane.f32.xlu0 %v644
    %v646 = vpop.xlane.xlu0 %645
    %v647 = vmul.f32 %v643, %v634
    %v648 = vmul.f32 %v646, %v634
    %v649 = vadd.f32 %v647, 1e-05
    %v650 = vadd.f32 %v648, 1e-05
    %v651 = vrsqrt.pop %v649
    %v652 = vmul.f32 %v651, %v649
    %v653 = vmul.f32 %v652, %v651
    %v654 = vmul.f32 0.5, %v653
    %v655 = vsub.f32 1.5, %v654
    %v656 = vmul.f32 %v651, %v655
    %vm657 = vweird.f32 %v649
    %vm658 = vweird.f32 %v651
    %vm659 = vmor %vm657, %vm658
    %v660 = vsel %vm659, %v651, %v656
    %v661 = vrsqrt.pop %v650
    %v662 = vmul.f32 %v661, %v650
    %v663 = vmul.f32 %v662, %v661
    %v664 = vmul.f32 0.5, %v663
    %v665 = vsub.f32 1.5, %v664
    %v666 = vmul.f32 %v661, %v665
    %vm667 = vweird.f32 %v650
    %vm668 = vweird.f32 %v661
    %vm669 = vmor %vm667, %vm668
    %v670 = vsel %vm669, %v661, %v666
    %v671 = vmul.f32 %v637, %v660
    %v672 = vmul.f32 %v638, %v670
    %v673 = vld [vmem:[%s5] sm:$0x1]
    %v675 = vperm.slane %v673, 0
    %v677 = vmul.f32 %v671, %v675
    %v678 = vmul.f32 %v672, %v675
    %v679 = vld [vmem:[%s6] sm:$0x1]
    %v681 = vperm.slane %v679, 0
    %v683 = vadd.f32 %v677, %v681
    %v684 = vadd.f32 %v678, %v681
    %685 = vst.msk [vmem:[#allocation7] sm:$0xff] %vm73, %v683
    %686 = vst.msk [vmem:[#allocation7 + $0x8] sm:$0xff] %vm73, %v684
    // Predicated region
    $region42: #{encoder_fused.1} parent=1 // pred_check
      _
    $region43: #{encoder_fused.1} parent=1 // pred_check_branch
      %688 = sbr.rel (0) target = $region45
    $region44: #{encoder_fused.1} parent=1 // pred_region
      %690 = vsyncadd [#allocation4], 0
      %s691 = sshll.u32 [#allocation7], 4
      %s692 = int_to_ptr.vmem [resolvable:$true] %s691
      %s693 = sshll.u32 %s8, 4
      %s694 = int_to_ptr.hbm [resolvable:$true] %s693
      %699 = dma.vmem_to_hbm [thread:$0]  %s692, 256, %s694, [#allocation4], 128, 128, 8
    $region45: #{encoder_fused.1} parent=1 // pred_fallthru
      _
    // Predicated region
    $region46: #{encoder_fused.1} parent=1 // pred_check
      _
    $region47: #{encoder_fused.1} parent=1 // pred_check_branch
      %701 = sbr.rel (0) target = $region49
    $region48: #{encoder_fused.1} parent=1 // pred_region
      %703 = vsyncadd [#allocation9], 0
      %s704 = sshll.u32 [#allocation8], 4
      %s705 = int_to_ptr.vmem [resolvable:$true] %s704
      %s706 = sshll.u32 %s9, 4
      %s707 = int_to_ptr.hbm [resolvable:$true] %s706
      %712 = dma.vmem_to_hbm [thread:$0]  %s705, 512, %s707, [#allocation9], 128, 128, 8
    $region49: #{encoder_fused.1} parent=1 // pred_fallthru
      _
    // Predicated region
    $region50: #{encoder_fused.1} parent=1 // pred_check
      _
    $region51: #{encoder_fused.1} parent=1 // pred_check_branch
      %714 = sbr.rel (0) target = $region53
    $region52: #{encoder_fused.1} parent=1 // pred_region
      %716 = dma.done [#allocation4], 256
    $region53: #{encoder_fused.1} parent=1 // pred_fallthru
      _
    // Predicated region
    $region54: #{encoder_fused.1} parent=1 // pred_check
      _
    $region55: #{encoder_fused.1} parent=1 // pred_check_branch
      %718 = sbr.rel (0) target = $region57
    $region56: #{encoder_fused.1} parent=1 // pred_region
      %720 = dma.done [#allocation9], 512
    $region57: #{encoder_fused.1} parent=1 // pred_fallthru
      _
    %721 = vsyncpa [#allocation3], 1
    %722 = vsyncpa [#allocation6], 1
    %723 = vsyncpa [#allocation4], 1
    %724 = vsyncpa [#allocation9], 1

</llo_original>
